<compile_context>
chip_gen: v7x
topology: tpu7x:2x2x1
jax: 0.10.0
libtpu: 0.0.40
codegen_flags: <defaults>
</compile_context>

<pallas_src>
import functools

import jax
import jax.numpy as jnp
from jax.experimental import pallas as pl
from jax.experimental.pallas import tpu as pltpu

EPS = 1e-5
LANE = 128
VMEM_LIMIT = 48 * 1024 * 1024          # explicit scoped-VMEM limit (tiled path)
FUSED_VMEM_BUDGET = 8 * 1024 * 1024    # conservative budget for the fused path


def _round_up(n, m):
    return ((n + m - 1) // m) * m


# ---------------------------------------------------------------------------
# Fused fast path: whole net in one grid=() kernel, everything VMEM-resident.
# ---------------------------------------------------------------------------
def _fused_kernel(x_ref, w1_ref, b1_ref, g_ref, beta_ref, w2_ref, b2_ref,
                  o_ref, *, true_b):
    h = jnp.dot(x_ref[...], w1_ref[...], preferred_element_type=jnp.float32)
    h = jnp.maximum(h + b1_ref[...], 0.0)                 # (Bp, Fp) f32

    # Shifted one-pass statistics: padded (all-zero) batch rows produce
    # exactly h0 = relu(b1), so d == 0 for them -> no masking needed.
    h0 = jnp.maximum(b1_ref[...], 0.0)
    d = h - h0
    inv_b = 1.0 / true_b
    md = jnp.sum(d, axis=0, keepdims=True) * inv_b
    mean = h0 + md
    var = jnp.maximum(jnp.sum(d * d, axis=0, keepdims=True) * inv_b - md * md,
                      0.0)                                  # biased variance

    scale = g_ref[...] * jax.lax.rsqrt(var + EPS)           # (1, Fp) f32
    shift = beta_ref[...] - mean * scale
    h_bn = h * scale + shift                                # f32 elementwise

    out = jnp.dot(h_bn.astype(jnp.bfloat16), w2_ref[...],
                  preferred_element_type=jnp.float32)
    o_ref[...] = (out + b2_ref[...]).astype(o_ref.dtype)


# ---------------------------------------------------------------------------
# Tiled path, stage 1: stats-only.  Each batch tile writes its own (8, Fp)
# partial sum / sum-of-squares row -> no accumulator, grid fully "parallel".
# ---------------------------------------------------------------------------
def _stats_kernel(x_ref, w1_ref, b1_ref, sum_ref, sq_ref):
    h = jnp.dot(x_ref[...], w1_ref[...], preferred_element_type=jnp.float32)
    h = jnp.maximum(h + b1_ref[...], 0.0)
    d = h - jnp.maximum(b1_ref[...], 0.0)    # shifted: zero-padded rows -> 0
    s = jnp.sum(d, axis=0, keepdims=True)
    q = jnp.sum(d * d, axis=0, keepdims=True)
    sum_ref[...] = jnp.broadcast_to(s, sum_ref.shape)
    sq_ref[...] = jnp.broadcast_to(q, sq_ref.shape)


# ---------------------------------------------------------------------------
# Tiled path, stage 2: recompute relu(x@W1+b1) and apply Linear2 with
# BatchNorm folded into W2'/b2'.  Purely MXU + DMA per tile.
# ---------------------------------------------------------------------------
def _out_kernel(x_ref, w1_ref, b1_ref, w2f_ref, b2f_ref, o_ref):
    h = jnp.dot(x_ref[...], w1_ref[...], preferred_element_type=jnp.float32)
    h = jnp.maximum(h + b1_ref[...], 0.0)
    out = jnp.dot(h.astype(jnp.bfloat16), w2f_ref[...],
                  preferred_element_type=jnp.float32)
    o_ref[...] = (out + b2f_ref[...]).astype(o_ref.dtype)


def linearnet_forward(x, w1, b1, gamma, beta, w2, b2, *,
                      block_b=512, allow_fused=True):
    """x: (B, input_size) f32; w1: (D, F); w2: (F, D). Returns (B, D) f32."""
    B, D = x.shape
    F = w1.shape[1]

    Dp = _round_up(D, LANE)
    Fp = _round_up(F, LANE)
    B16 = _round_up(B, 16)          # bf16-friendly sublane multiple

    f32, bf16 = jnp.float32, jnp.bfloat16
    pad2 = lambda a, r, c: jnp.pad(a, ((0, r - a.shape[0]), (0, c - a.shape[1])))

    w1_p = pad2(w1.astype(bf16), Dp, Fp)
    b1_p = pad2(b1.reshape(1, F).astype(f32), 1, Fp)    # pads are 0 -> padded
    g_p = pad2(gamma.reshape(1, F).astype(f32), 1, Fp)  # lanes stay exactly 0
    be_p = pad2(beta.reshape(1, F).astype(f32), 1, Fp)
    b2_p = pad2(b2.reshape(1, D).astype(f32), 1, Dp)

    # ---- fused single-call fast path (small problems) ---------------------
    fused_bytes = B16 * (6 * Dp + 8 * Fp) + 4 * Dp * Fp
    if allow_fused and fused_bytes <= FUSED_VMEM_BUDGET:
        x_p = pad2(x.astype(bf16), B16, Dp)
        w2_p = pad2(w2.astype(bf16), Fp, Dp)
        out_p = pl.pallas_call(
            functools.partial(_fused_kernel, true_b=B),
            out_shape=jax.ShapeDtypeStruct((B16, Dp), f32),
        )(x_p, w1_p, b1_p, g_p, be_p, w2_p, b2_p)
        return out_p[:B, :D]

    # ---- tiled two-pass path ----------------------------------------------
    block_b = _round_up(block_b, 16)
    TB = min(block_b, B16)
    B_pad = _round_up(B16, TB)
    nb = B_pad // TB

    x_p = pad2(x.astype(bf16), B_pad, Dp)               # bf16 MXU operand

    xspec = pl.BlockSpec((TB, Dp), lambda i: (i, 0))     # pipelined batch tiles
    # Constant-index (VMEM-resident) operands: single-buffered.
    const = lambda shape: pl.BlockSpec(shape, lambda i: (0, 0),
                                       pipeline_mode=pl.Buffered(1))
    cparams = pltpu.CompilerParams(dimension_semantics=("parallel",),
                                   vmem_limit_bytes=VMEM_LIMIT)

    # Stage 1: per-tile partial BN statistics (shifted sums), tiny outputs.
    p_sum, p_sq = pl.pallas_call(
        _stats_kernel,
        grid=(nb,),
        in_specs=[xspec, const((Dp, Fp)), const((1, Fp))],
        out_specs=(pl.BlockSpec((8, Fp), lambda i: (i, 0)),
                   pl.BlockSpec((8, Fp), lambda i: (i, 0))),
        out_shape=(jax.ShapeDtypeStruct((nb * 8, Fp), f32),
                   jax.ShapeDtypeStruct((nb * 8, Fp), f32)),
        compiler_params=cparams,
    )(x_p, w1_p, b1_p)

    # Tiny epilogue in plain JAX: combine partials, fold BN into W2'/b2'.
    sd = p_sum.reshape(nb, 8, Fp)[:, 0, :].sum(axis=0, keepdims=True)
    sq = p_sq.reshape(nb, 8, Fp)[:, 0, :].sum(axis=0, keepdims=True)
    h0 = jnp.maximum(b1_p, 0.0)
    md = sd / B
    mean = h0 + md
    var = jnp.maximum(sq / B - md * md, 0.0)             # biased variance
    scale = g_p * jax.lax.rsqrt(var + EPS)               # (1, Fp)
    shift = be_p - mean * scale
    w2_f32_p = pad2(w2.astype(f32), Fp, Dp)
    w2_fold = (scale.reshape(Fp, 1) * w2_f32_p).astype(bf16)   # (Fp, Dp) bf16
    b2_fold = shift @ w2_f32_p + b2_p                          # (1, Dp) f32

    # Stage 2: recompute Linear1+ReLU, apply folded Linear2.  Fully parallel.
    out_p = pl.pallas_call(
        _out_kernel,
        grid=(nb,),
        in_specs=[xspec, const((Dp, Fp)), const((1, Fp)),
                  const((Fp, Dp)), const((1, Dp))],
        out_specs=pl.BlockSpec((TB, Dp), lambda i: (i, 0)),   # lane-dense out
        out_shape=jax.ShapeDtypeStruct((B_pad, Dp), f32),
        compiler_params=cparams,
    )(x_p, w1_p, b1_p, w2_fold, b2_fold)

    return out_p[:B, :D]


def reference_forward(x, w1, b1, gamma, beta, w2, b2):
    h = jnp.maximum(x @ w1 + b1, 0.0)
    mean = jnp.mean(h, axis=0, keepdims=True)
    var = jnp.mean((h - mean) ** 2, axis=0, keepdims=True)
    h = (h - mean) / jnp.sqrt(var + EPS) * gamma + beta
    return h @ w2 + b2


if __name__ == "__main__":
    # Shapes consistent with the module: input_size=32, num_features=64.
    D, F = 32, 64

    key = jax.random.PRNGKey(0)
    kx, k1, k2, k3, k4, k5, k6, kx2 = jax.random.split(key, 8)

    # Deterministic synthetic parameters (PyTorch-Linear-like fan-in init).
    lim1 = D ** -0.5
    w1 = jax.random.uniform(k1, (D, F), jnp.float32, -lim1, lim1)
    b1 = jax.random.uniform(k2, (F,), jnp.float32, -lim1, lim1)
    gamma = jax.random.uniform(k5, (F,), jnp.float32, 0.5, 1.5)
    beta = jax.random.uniform(k6, (F,), jnp.float32, -0.5, 0.5)
    lim2 = F ** -0.5
    w2 = jax.random.uniform(k3, (F, D), jnp.float32, -lim2, lim2)
    b2 = jax.random.uniform(k4, (D,), jnp.float32, -lim2, lim2)

    # 1) Small batch -> fused single-kernel fast path.
    x_small = jax.random.normal(kx, (8, D), dtype=jnp.float32)
    fwd = jax.jit(linearnet_forward)
    out_small = jax.block_until_ready(fwd(x_small, w1, b1, gamma, beta, w2, b2))
    ref_small = reference_forward(x_small, w1, b1, gamma, beta, w2, b2)
    assert out_small.shape == (8, D)
    # bf16 MXU operands with f32 accumulation -> loosened tolerance vs f32 ref.
    assert jnp.allclose(out_small, ref_small, atol=5e-2, rtol=5e-2)

    # 2) Larger batch with a small block -> tiled two-pass path
    #    (parallel stats tiles + folded-BN Linear2), exercising row padding.
    x_big = jax.random.normal(kx2, (200, D), dtype=jnp.float32)
    fwd_tiled = jax.jit(functools.partial(linearnet_forward,
                                          block_b=128, allow_fused=False))
    out_big = jax.block_until_ready(fwd_tiled(x_big, w1, b1, gamma, beta, w2, b2))
    ref_big = reference_forward(x_big, w1, b1, gamma, beta, w2, b2)
    assert out_big.shape == (200, D)
    assert jnp.allclose(out_big, ref_big, atol=5e-2, rtol=5e-2)

    print("KERNEL_OK")
</pallas_src>

<mosaic_0001>
module attributes {stable_mosaic.version = 11 : i64} {
  func.func @_fused_kernel(%arg0: memref<16x128xbf16, #tpu.memory_space<vmem>>, %arg1: memref<128x128xbf16, #tpu.memory_space<vmem>>, %arg2: memref<1x128xf32, #tpu.memory_space<vmem>>, %arg3: memref<1x128xf32, #tpu.memory_space<vmem>>, %arg4: memref<1x128xf32, #tpu.memory_space<vmem>>, %arg5: memref<128x128xbf16, #tpu.memory_space<vmem>>, %arg6: memref<1x128xf32, #tpu.memory_space<vmem>>, %arg7: memref<16x128xf32, #tpu.memory_space<vmem>>) attributes {dimension_semantics = [], scalar_prefetch = 0 : i64, scratch_operands = 0 : i64, tpu.core_type = #tpu.core_type<tc>} {
    %c0 = arith.constant 0 : index
    %c0_0 = arith.constant 0 : index
    %0 = vector.load %arg0[%c0, %c0_0] : memref<16x128xbf16, #tpu.memory_space<vmem>>, vector<16x128xbf16>
    %c0_1 = arith.constant 0 : index
    %c0_2 = arith.constant 0 : index
    %1 = vector.load %arg1[%c0_1, %c0_2] : memref<128x128xbf16, #tpu.memory_space<vmem>>, vector<128x128xbf16>
    %cst = arith.constant dense<0.000000e+00> : vector<16x128xf32>
    %2 = tpu.matmul %0, %1, %cst {dimension_numbers = #tpu.dot_dimension_numbers<[1], [0], [0], [1], [0, 0, 1, 1], [], []>} : vector<16x128xbf16>, vector<128x128xbf16>, vector<16x128xf32> -> vector<16x128xf32>
    %c0_3 = arith.constant 0 : index
    %c0_4 = arith.constant 0 : index
    %3 = vector.load %arg2[%c0_3, %c0_4] : memref<1x128xf32, #tpu.memory_space<vmem>>, vector<1x128xf32>
    %4 = vector.broadcast %3 : vector<1x128xf32> to vector<16x128xf32>
    %5 = arith.addf %2, %4 : vector<16x128xf32>
    %cst_5 = arith.constant 0.000000e+00 : f32
    %6 = vector.broadcast %cst_5 : f32 to vector<16x128xf32>
    %7 = arith.maximumf %5, %6 : vector<16x128xf32>
    %c0_6 = arith.constant 0 : index
    %c0_7 = arith.constant 0 : index
    %8 = vector.load %arg2[%c0_6, %c0_7] : memref<1x128xf32, #tpu.memory_space<vmem>>, vector<1x128xf32>
    %cst_8 = arith.constant 0.000000e+00 : f32
    %9 = vector.broadcast %cst_8 : f32 to vector<1x128xf32>
    %10 = arith.maximumf %8, %9 : vector<1x128xf32>
    %11 = vector.broadcast %10 : vector<1x128xf32> to vector<16x128xf32>
    %12 = arith.subf %7, %11 : vector<16x128xf32>
    %cst_9 = arith.constant dense<0.000000e+00> : vector<128xf32>
    %13 = vector.multi_reduction <add>, %12, %cst_9 [0] : vector<16x128xf32> to vector<128xf32>
    %14 = vector.shape_cast %13 : vector<128xf32> to vector<1x128xf32>
    %cst_10 = arith.constant 1.250000e-01 : f32
    %15 = vector.broadcast %cst_10 : f32 to vector<1x128xf32>
    %16 = arith.mulf %14, %15 : vector<1x128xf32>
    %17 = arith.addf %10, %16 : vector<1x128xf32>
    %18 = arith.mulf %12, %12 : vector<16x128xf32>
    %cst_11 = arith.constant dense<0.000000e+00> : vector<128xf32>
    %19 = vector.multi_reduction <add>, %18, %cst_11 [0] : vector<16x128xf32> to vector<128xf32>
    %20 = vector.shape_cast %19 : vector<128xf32> to vector<1x128xf32>
    %cst_12 = arith.constant 1.250000e-01 : f32
    %21 = vector.broadcast %cst_12 : f32 to vector<1x128xf32>
    %22 = arith.mulf %20, %21 : vector<1x128xf32>
    %23 = arith.mulf %16, %16 : vector<1x128xf32>
    %24 = arith.subf %22, %23 : vector<1x128xf32>
    %cst_13 = arith.constant 0.000000e+00 : f32
    %25 = vector.broadcast %cst_13 : f32 to vector<1x128xf32>
    %26 = arith.maximumf %24, %25 : vector<1x128xf32>
    %c0_14 = arith.constant 0 : index
    %c0_15 = arith.constant 0 : index
    %27 = vector.load %arg3[%c0_14, %c0_15] : memref<1x128xf32, #tpu.memory_space<vmem>>, vector<1x128xf32>
    %cst_16 = arith.constant 9.99999974E-6 : f32
    %28 = vector.broadcast %cst_16 : f32 to vector<1x128xf32>
    %29 = arith.addf %26, %28 : vector<1x128xf32>
    %30 = math.rsqrt %29 : vector<1x128xf32>
    %31 = arith.mulf %27, %30 : vector<1x128xf32>
    %c0_17 = arith.constant 0 : index
    %c0_18 = arith.constant 0 : index
    %32 = vector.load %arg4[%c0_17, %c0_18] : memref<1x128xf32, #tpu.memory_space<vmem>>, vector<1x128xf32>
    %33 = arith.mulf %17, %31 : vector<1x128xf32>
    %34 = arith.subf %32, %33 : vector<1x128xf32>
    %35 = vector.broadcast %31 : vector<1x128xf32> to vector<16x128xf32>
    %36 = arith.mulf %7, %35 : vector<16x128xf32>
    %37 = vector.broadcast %34 : vector<1x128xf32> to vector<16x128xf32>
    %38 = arith.addf %36, %37 : vector<16x128xf32>
    %39 = arith.truncf %38 : vector<16x128xf32> to vector<16x128xbf16>
    %c0_19 = arith.constant 0 : index
    %c0_20 = arith.constant 0 : index
    %40 = vector.load %arg5[%c0_19, %c0_20] : memref<128x128xbf16, #tpu.memory_space<vmem>>, vector<128x128xbf16>
    %cst_21 = arith.constant dense<0.000000e+00> : vector<16x128xf32>
    %41 = tpu.matmul %39, %40, %cst_21 {dimension_numbers = #tpu.dot_dimension_numbers<[1], [0], [0], [1], [0, 0, 1, 1], [], []>} : vector<16x128xbf16>, vector<128x128xbf16>, vector<16x128xf32> -> vector<16x128xf32>
    %c0_22 = arith.constant 0 : index
    %c0_23 = arith.constant 0 : index
    %42 = vector.load %arg6[%c0_22, %c0_23] : memref<1x128xf32, #tpu.memory_space<vmem>>, vector<1x128xf32>
    %43 = vector.broadcast %42 : vector<1x128xf32> to vector<16x128xf32>
    %44 = arith.addf %41, %43 : vector<16x128xf32>
    %c0_24 = arith.constant 0 : index
    %c0_25 = arith.constant 0 : index
    %45 = vector.load %arg7[%c0_24, %c0_25] : memref<16x128xf32, #tpu.memory_space<vmem>>, vector<16x128xf32>
    tpu.vector_store %arg7[%c0_24, %c0_25], %44 {strides = array<i32>} : memref<16x128xf32, #tpu.memory_space<vmem>>, vector<16x128xf32>,
    return
  }
}

</mosaic_0001>

<llo_original>
// kernel: linearnet_forward.1
$region0: #{linearnet_forward.1}
  #allocation0 [shape = 'u32[]', space=smem, size = 0x4, offset = 0x4, fixed_abs, tag = 'smem constant byte address 0x4 - core index']
  #allocation1 [shape = 'u32[144,128]{1,0:T(1,128)}', space=vmem, size = 0x12000, scoped, tag = 'internal scratch']
  %s0 = inlined_call_operand.vmem [shape: bf16[16,128], index: 0, kind: input, shape index: {}]
  %s1 = inlined_call_operand.vmem [shape: bf16[128,128], index: 1, kind: input, shape index: {}]
  %s2 = inlined_call_operand.vmem [shape: f32[1,128], index: 2, kind: input, shape index: {}]
  %s3 = inlined_call_operand.vmem [shape: f32[1,128], index: 3, kind: input, shape index: {}]
  %s4 = inlined_call_operand.vmem [shape: f32[1,128], index: 4, kind: input, shape index: {}]
  %s5 = inlined_call_operand.vmem [shape: bf16[128,128], index: 5, kind: input, shape index: {}]
  %s6 = inlined_call_operand.vmem [shape: f32[1,128], index: 6, kind: input, shape index: {}]
  %s7 = inlined_call_operand.vmem [shape: f32[16,128], index: 7, kind: output, shape index: {}]
  %s8 = sld [smem:[#allocation0]]
  $region38: #{linearnet_forward.1} parent=0
    _
  %s10 = ssub.s32 1, %s8
  %s11 = scalar_select 0, %s10, %s8
  // Predicated region
  $region2: #{linearnet_forward.1} parent=0 // pred_check
    _
  $region3: #{linearnet_forward.1} parent=0 // pred_check_branch
    %13 = sbr.rel (0) target = $region5
  $region4: #{linearnet_forward.1} parent=0 // pred_region
    _
  $region5: #{linearnet_forward.1} parent=0 // pred_fallthru
    _
  // Predicated region
  $region6: #{linearnet_forward.1} parent=0 // pred_check
    _
  $region7: #{linearnet_forward.1} parent=0 // pred_check_branch
    %15 = sbr.rel (0) target = $region9
  $region8: #{linearnet_forward.1} parent=0 // pred_region
    _
  $region9: #{linearnet_forward.1} parent=0 // pred_fallthru
    _
  // Predicated region
  $region10: #{linearnet_forward.1} parent=0 // pred_check
    _
  $region11: #{linearnet_forward.1} parent=0 // pred_check_branch
    %17 = sbr.rel (0) target = $region13
  $region12: #{linearnet_forward.1} parent=0 // pred_region
    _
  $region13: #{linearnet_forward.1} parent=0 // pred_fallthru
    _
  // Predicated region
  $region14: #{linearnet_forward.1} parent=0 // pred_check
    _
  $region15: #{linearnet_forward.1} parent=0 // pred_check_branch
    %19 = sbr.rel (0) target = $region17
  $region16: #{linearnet_forward.1} parent=0 // pred_region
    _
  $region17: #{linearnet_forward.1} parent=0 // pred_fallthru
    _
  // Predicated region
  $region18: #{linearnet_forward.1} parent=0 // pred_check
    _
  $region19: #{linearnet_forward.1} parent=0 // pred_check_branch
    %21 = sbr.rel (0) target = $region21
  $region20: #{linearnet_forward.1} parent=0 // pred_region
    _
  $region21: #{linearnet_forward.1} parent=0 // pred_fallthru
    _
  // Predicated region
  $region22: #{linearnet_forward.1} parent=0 // pred_check
    _
  $region23: #{linearnet_forward.1} parent=0 // pred_check_branch
    %23 = sbr.rel (0) target = $region25
  $region24: #{linearnet_forward.1} parent=0 // pred_region
    _
  $region25: #{linearnet_forward.1} parent=0 // pred_fallthru
    _
  // Predicated region
  $region26: #{linearnet_forward.1} parent=0 // pred_check
    _
  $region27: #{linearnet_forward.1} parent=0 // pred_check_branch
    %25 = sbr.rel (0) target = $region29
  $region28: #{linearnet_forward.1} parent=0 // pred_region
    _
  $region29: #{linearnet_forward.1} parent=0 // pred_fallthru
    _
  %v27 = vld [vmem:[%s0] sm:$0xf]
  %v28 = vld [vmem:[%s0 + $0x4] sm:$0xf]
  %v29 = vld [vmem:[%s1] sm:$0xf]
  %v30 = vld [vmem:[%s1 + $0x4] sm:$0xf]
  %v31 = vld [vmem:[%s1 + $0x8] sm:$0xf]
  %v32 = vld [vmem:[%s1 + $0xc] sm:$0xf]
  %v33 = vld [vmem:[%s1 + $0x10] sm:$0xf]
  %v34 = vld [vmem:[%s1 + $0x14] sm:$0xf]
  %v35 = vld [vmem:[%s1 + $0x18] sm:$0xf]
  %v36 = vld [vmem:[%s1 + $0x1c] sm:$0xf]
  %v37 = vld [vmem:[%s1 + $0x20] sm:$0xf]
  %v38 = vld [vmem:[%s1 + $0x24] sm:$0xf]
  %v39 = vld [vmem:[%s1 + $0x28] sm:$0xf]
  %v40 = vld [vmem:[%s1 + $0x2c] sm:$0xf]
  %v41 = vld [vmem:[%s1 + $0x30] sm:$0xf]
  %v42 = vld [vmem:[%s1 + $0x34] sm:$0xf]
  %v43 = vld [vmem:[%s1 + $0x38] sm:$0xf]
  %v44 = vld [vmem:[%s1 + $0x3c] sm:$0xf]
  %v45 = vld [vmem:[%s2] sm:$0x1]
  %v47 = vlaneseq
  %v48 = vshrl.u32 %v47, 7
  %v49 = vsub.s32 0, %v48
  %v50 = vrot.slane %v45, %v49
  %v54 = vunpack.c.l.b16 %v27
  %v55 = vunpack.c.l.b16 %v28
  %v56 = vpack.c.b16 %v55, %v54
  %v74 = vunpack.c.l.b16 %v29
  %v75 = vunpack.c.l.b16 %v30
  %v76 = vunpack.c.l.b16 %v31
  %v77 = vunpack.c.l.b16 %v32
  %v78 = vunpack.c.l.b16 %v33
  %v79 = vunpack.c.l.b16 %v34
  %v80 = vunpack.c.l.b16 %v35
  %v81 = vunpack.c.l.b16 %v36
  %v82 = vunpack.c.l.b16 %v37
  %v83 = vunpack.c.l.b16 %v38
  %v84 = vunpack.c.l.b16 %v39
  %v85 = vunpack.c.l.b16 %v40
  %v86 = vunpack.c.l.b16 %v41
  %v87 = vunpack.c.l.b16 %v42
  %v88 = vunpack.c.l.b16 %v43
  %v89 = vunpack.c.l.b16 %v44
  %v90 = vpack.c.b16 %v75, %v74
  %v91 = vpack.c.b16 %v77, %v76
  %v92 = vpack.c.b16 %v79, %v78
  %v93 = vpack.c.b16 %v81, %v80
  %v94 = vpack.c.b16 %v83, %v82
  %v95 = vpack.c.b16 %v85, %v84
  %v96 = vpack.c.b16 %v87, %v86
  %v97 = vpack.c.b16 %v89, %v88
  %106 = vmatprep.subr.bf16.mxu0 0
  %107 = vmatpush1.bf16.msra.mxu0 %v90
  %108 = vmatprep.subr.bf16.mxu0 0
  %109 = vmatpush1.bf16.msra.mxu0 %v91
  %110 = vmatprep.subr.bf16.mxu0 0
  %111 = vmatpush1.bf16.msra.mxu0 %v92
  %112 = vmatprep.subr.bf16.mxu0 0
  %113 = vmatpush1.bf16.msra.mxu0 %v93
  %114 = vmatprep.subr.bf16.mxu0 0
  %115 = vmatpush1.bf16.msra.mxu0 %v94
  %116 = vmatprep.subr.bf16.mxu0 0
  %117 = vmatpush1.bf16.msra.mxu0 %v95
  %118 = vmatprep.subr.bf16.mxu0 0
  %119 = vmatpush1.bf16.msra.mxu0 %v96
  %120 = vmatprep.subr.bf16.mxu0 0
  %121 = vmatpush1.bf16.msra.mxu0 %v97
  %122 = vmatprep.subr.bf16.mxu0 0
  %123 = vmatpush1.bf16.msra.mxu0 0
  %124 = vmatprep.subr.bf16.mxu0 0
  %125 = vmatpush1.bf16.msra.mxu0 0
  %126 = vmatprep.subr.bf16.mxu0 0
  %127 = vmatpush1.bf16.msra.mxu0 0
  %128 = vmatprep.subr.bf16.mxu0 0
  %129 = vmatpush1.bf16.msra.mxu0 0
  %130 = vmatprep.subr.bf16.mxu0 0
  %131 = vmatpush1.bf16.msra.mxu0 0
  %132 = vmatprep.subr.bf16.mxu0 0
  %133 = vmatpush1.bf16.msra.mxu0 0
  %134 = vmatprep.subr.bf16.mxu0 0
  %135 = vmatpush1.bf16.msra.mxu0 0
  %136 = vmatprep.subr.bf16.mxu0 0
  %137 = vmatpush1.bf16.msra.mxu0 0
  %138 = vmatprep.mubr.bf16.mxu0 0
  %139 = vmatmul.mubr.bf16.gmra.mrb[0].mxu0 %v56
  %v140 = vpop.f32.mrb[0].mxu0
  %v141 = vadd.f32 %v50, %v140
  %v142 = vpop.f32.mrb[0].mxu0
  %v143 = vpop.f32.mrb[0].mxu0
  %v144 = vadd.f32 %v50, %v143
  %v145 = vpop.f32.mrb[0].mxu0
  %146 = vdwg.mxu0
  %v147 = vmax.f32 %v141, 0.0
  %v148 = vmax.f32 %v144, 0.0
  %v149 = vmax.f32 %v45, 0.0
  %v151 = vlaneseq
  %v152 = vshrl.u32 %v151, 7
  %v153 = vsub.s32 0, %v152
  %v154 = vrot.slane %v149, %v153
  %v156 = vsub.f32 %v147, %v154
  %v157 = vsub.f32 %v148, %v154
  %v158 = vadd.f32 %v156, %v157
  %v159 = vrot.slane %v158, 4
  %v160 = vadd.f32 %v158, %v159
  %v161 = vrot.slane %v160, 2
  %v162 = vadd.f32 %v160, %v161
  %v163 = vrot.slane %v162, 1
  %v164 = vadd.f32 %v162, %v163
  %v165 = vmul.f32 %v164, 0.125
  %v166 = vadd.f32 %v149, %v165
  %v167 = vmul.f32 %v156, %v156
  %v168 = vmul.f32 %v157, %v157
  %v169 = vadd.f32 %v167, %v168
  %v170 = vrot.slane %v169, 4
  %v171 = vadd.f32 %v169, %v170
  %v172 = vrot.slane %v171, 2
  %v173 = vadd.f32 %v171, %v172
  %v174 = vrot.slane %v173, 1
  %v175 = vadd.f32 %v173, %v174
  %v176 = vmul.f32 %v175, 0.125
  %v177 = vmul.f32 %v165, %v165
  %v178 = vsub.f32 %v176, %v177
  %v179 = vmax.f32 %v178, 0.0
  %v180 = vld [vmem:[%s3] sm:$0x1]
  %v181 = vadd.f32 %v179, 1e-05
  %v182 = vrsqrt.pop %v181
  %v183 = vmul.f32 %v180, %v182
  %v184 = vld [vmem:[%s4] sm:$0x1]
  %v185 = vmul.f32 %v166, %v183
  %v186 = vsub.f32 %v184, %v185
  %v188 = vlaneseq
  %v189 = vshrl.u32 %v188, 7
  %v190 = vsub.s32 0, %v189
  %v191 = vrot.slane %v183, %v190
  %v193 = vmul.f32 %v147, %v191
  %v194 = vmul.f32 %v148, %v191
  %v196 = vlaneseq
  %v197 = vshrl.u32 %v196, 7
  %v198 = vsub.s32 0, %v197
  %v199 = vrot.slane %v186, %v198
  %v201 = vadd.f32 %v193, %v199
  %v202 = vadd.f32 %v194, %v199
  %v203 = vpack.c.bf16 %v202, %v201
  %v204 = vld [vmem:[%s5] sm:$0xf]
  %v205 = vld [vmem:[%s5 + $0x4] sm:$0xf]
  %v206 = vld [vmem:[%s5 + $0x8] sm:$0xf]
  %v207 = vld [vmem:[%s5 + $0xc] sm:$0xf]
  %v208 = vld [vmem:[%s5 + $0x10] sm:$0xf]
  %v209 = vld [vmem:[%s5 + $0x14] sm:$0xf]
  %v210 = vld [vmem:[%s5 + $0x18] sm:$0xf]
  %v211 = vld [vmem:[%s5 + $0x1c] sm:$0xf]
  %v212 = vld [vmem:[%s5 + $0x20] sm:$0xf]
  %v213 = vld [vmem:[%s5 + $0x24] sm:$0xf]
  %v214 = vld [vmem:[%s5 + $0x28] sm:$0xf]
  %v215 = vld [vmem:[%s5 + $0x2c] sm:$0xf]
  %v216 = vld [vmem:[%s5 + $0x30] sm:$0xf]
  %v217 = vld [vmem:[%s5 + $0x34] sm:$0xf]
  %v218 = vld [vmem:[%s5 + $0x38] sm:$0xf]
  %v219 = vld [vmem:[%s5 + $0x3c] sm:$0xf]
  %v220 = vld [vmem:[%s6] sm:$0x1]
  %v222 = vlaneseq
  %v223 = vshrl.u32 %v222, 7
  %v224 = vsub.s32 0, %v223
  %v225 = vrot.slane %v220, %v224
  %v243 = vunpack.c.l.b16 %v204
  %v244 = vunpack.c.l.b16 %v205
  %v245 = vunpack.c.l.b16 %v206
  %v246 = vunpack.c.l.b16 %v207
  %v247 = vunpack.c.l.b16 %v208
  %v248 = vunpack.c.l.b16 %v209
  %v249 = vunpack.c.l.b16 %v210
  %v250 = vunpack.c.l.b16 %v211
  %v251 = vunpack.c.l.b16 %v212
  %v252 = vunpack.c.l.b16 %v213
  %v253 = vunpack.c.l.b16 %v214
  %v254 = vunpack.c.l.b16 %v215
  %v255 = vunpack.c.l.b16 %v216
  %v256 = vunpack.c.l.b16 %v217
  %v257 = vunpack.c.l.b16 %v218
  %v258 = vunpack.c.l.b16 %v219
  %v259 = vpack.c.b16 %v244, %v243
  %v260 = vpack.c.b16 %v246, %v245
  %v261 = vpack.c.b16 %v248, %v247
  %v262 = vpack.c.b16 %v250, %v249
  %v263 = vpack.c.b16 %v252, %v251
  %v264 = vpack.c.b16 %v254, %v253
  %v265 = vpack.c.b16 %v256, %v255
  %v266 = vpack.c.b16 %v258, %v257
  %275 = vmatprep.subr.bf16.mxu0 0
  %276 = vmatpush1.bf16.msra.mxu0 %v259
  %277 = vmatprep.subr.bf16.mxu0 0
  %278 = vmatpush1.bf16.msra.mxu0 %v260
  %279 = vmatprep.subr.bf16.mxu0 0
  %280 = vmatpush1.bf16.msra.mxu0 %v261
  %281 = vmatprep.subr.bf16.mxu0 0
  %282 = vmatpush1.bf16.msra.mxu0 %v262
  %283 = vmatprep.subr.bf16.mxu0 0
  %284 = vmatpush1.bf16.msra.mxu0 %v263
  %285 = vmatprep.subr.bf16.mxu0 0
  %286 = vmatpush1.bf16.msra.mxu0 %v264
  %287 = vmatprep.subr.bf16.mxu0 0
  %288 = vmatpush1.bf16.msra.mxu0 %v265
  %289 = vmatprep.subr.bf16.mxu0 0
  %290 = vmatpush1.bf16.msra.mxu0 %v266
  %291 = vmatprep.subr.bf16.mxu0 0
  %292 = vmatpush1.bf16.msra.mxu0 0
  %293 = vmatprep.subr.bf16.mxu0 0
  %294 = vmatpush1.bf16.msra.mxu0 0
  %295 = vmatprep.subr.bf16.mxu0 0
  %296 = vmatpush1.bf16.msra.mxu0 0
  %297 = vmatprep.subr.bf16.mxu0 0
  %298 = vmatpush1.bf16.msra.mxu0 0
  %299 = vmatprep.subr.bf16.mxu0 0
  %300 = vmatpush1.bf16.msra.mxu0 0
  %301 = vmatprep.subr.bf16.mxu0 0
  %302 = vmatpush1.bf16.msra.mxu0 0
  %303 = vmatprep.subr.bf16.mxu0 0
  %304 = vmatpush1.bf16.msra.mxu0 0
  %305 = vmatprep.subr.bf16.mxu0 0
  %306 = vmatpush1.bf16.msra.mxu0 0
  %307 = vmatprep.mubr.bf16.mxu0 0
  %308 = vmatmul.mubr.bf16.gmra.mrb[0].mxu0 %v203
  %v309 = vpop.f32.mrb[0].mxu0
  %v310 = vadd.f32 %v225, %v309
  %v311 = vpop.f32.mrb[0].mxu0
  %v312 = vpop.f32.mrb[0].mxu0
  %v313 = vadd.f32 %v225, %v312
  %v314 = vpop.f32.mrb[0].mxu0
  %315 = vdwg.mxu0
  %316 = vst [vmem:[%s7] sm:$0xff] %v310
  %317 = vst [vmem:[%s7 + $0x8] sm:$0xff] %v313
  // Predicated region
  $region30: #{linearnet_forward.1} parent=0 // pred_check
    _
  $region31: #{linearnet_forward.1} parent=0 // pred_check_branch
    %319 = sbr.rel (0) target = $region33
  $region32: #{linearnet_forward.1} parent=0 // pred_region
    _
  $region33: #{linearnet_forward.1} parent=0 // pred_fallthru
    _
  // Predicated region
  $region34: #{linearnet_forward.1} parent=0 // pred_check
    _
  $region35: #{linearnet_forward.1} parent=0 // pred_check_branch
    %321 = sbr.rel (0) target = $region37
  $region36: #{linearnet_forward.1} parent=0 // pred_region
    _
  $region37: #{linearnet_forward.1} parent=0 // pred_fallthru
    _

</llo_original>
